<compile_context>
chip_gen: v6e
topology: v6e:2x2x1
jax: 0.10.0
libtpu: 0.0.40
codegen_flags: <defaults>
</compile_context>

<pallas_src>
import math
import functools

import jax
import jax.numpy as jnp
from jax.experimental import pallas as pl
from jax.experimental.pallas import tpu as pltpu


def _attention_kernel(use_tanh, C, write_e,
                      qp_ref, ref_ref, wct_ref, bc_ref, v_ref, *out_refs):
    # qp_ref : (B, D)     query already projected (query @ Wq^T + bq), f32.
    # ref_ref: (TL, B, D) encoder states, native layout / native dtype.
    # wct_ref: (D, D)     Wc^T, same dtype as ref (bf16 stream stays bf16).
    # bc_ref : (1, D)     f32
    # v_ref  : (1, D)     f32
    tl, b, d = ref_ref.shape

    # Tall-M MXU matmul: flatten (TL, B, D) -> (TL*B, D) with D (lanes) as the
    # contraction axis.  B is sublane-aligned, so the reshape is relayout-free.
    r2 = ref_ref[...].reshape(tl * b, d)
    e2 = jnp.dot(r2, wct_ref[...], preferred_element_type=jnp.float32) + bc_ref[...]
    e3 = e2.reshape(tl, b, d)                                    # (TL, B, D) f32

    # u = v . tanh(qp + e): EUP tanh + VPU multiply + XLU lane reduce
    # (keeps the MXU free for the Wc matmul).
    t = jnp.tanh(e3 + qp_ref[...][None, :, :])
    u = jnp.sum(t * v_ref[...][None, :, :], axis=2)              # (TL, B)
    if use_tanh:
        u = C * jnp.tanh(u)

    if write_e:
        e_out_ref, logits_out_ref = out_refs
        # Write e directly in the PyTorch (B, D, L) layout: per-batch 2D
        # transpose (XLU slot, free under the HBM roofline) -> (D, TL) slab.
        # This removes the wrapper-side full-tensor transpose pass.
        for bi in range(b):
            e_out_ref[bi] = e3[:, bi, :].T.astype(e_out_ref.dtype)
    else:
        (logits_out_ref,) = out_refs
    # Lane-dense logits block (B, TL) with L on lanes (no wrapper transpose,
    # unmasked stores once TL is a multiple of 128).
    logits_out_ref[...] = u.T.astype(logits_out_ref.dtype)


def _choose_tl(L, per_l_bytes, stream_budget):
    """Pick the L-tile: double-buffered streaming blocks fit `stream_budget`,
    TL is a multiple of 128 whenever TL < L (lane-dense e / logits output
    blocks), and large L is split into >= 2 grid steps so both v7x TensorCores
    and the DMA/compute pipeline engage."""
    tl = max(1, stream_budget // per_l_bytes)
    if L >= 256:
        tl = min(tl, 128 * max(1, pl.cdiv(L, 4 * 128)))   # target ~2-4+ steps
    if tl >= L:
        return int(L)
    return int(max(128, (tl // 128) * 128))


def attention_forward(query, ref, wq, bq, wc, bc, v, *, use_tanh=False, C=10.0,
                      return_e=True):
    """query: (B, D); ref: (L, B, D).
    Returns (e: (B, D, L) or None, logits: (B, L)) in the PyTorch layouts."""
    B, D = query.shape
    L = ref.shape[0]

    # Pad B to a multiple of 8 (sublane alignment) only when needed, so the
    # in-kernel flatten / per-batch slices stay relayout-free.
    Bp = ((B + 7) // 8) * 8
    if Bp != B:
        query = jnp.pad(query, ((0, Bp - B), (0, 0)))
        ref = jnp.pad(ref, ((0, 0), (0, Bp - B), (0, 0)))

    # Stream ref in its native dtype: bf16 stays bf16 (halves the dominant HBM
    # read, native-rate MXU); anything else is treated as f32.
    if ref.dtype == jnp.bfloat16:
        mm_dtype, e_dtype = jnp.bfloat16, jnp.bfloat16
    else:
        if ref.dtype != jnp.float32:
            ref = ref.astype(jnp.float32)
        mm_dtype, e_dtype = jnp.float32, jnp.float32

    # Hoisted query projection (tiny matmul, done once) and pre-transposed Wc
    # (no in-kernel weight transposes).  VPU/EUP-side operands stay f32.
    qp = (query.astype(jnp.float32) @ wq.T.astype(jnp.float32)
          + bq.astype(jnp.float32))                              # (Bp, D)
    wct = jnp.transpose(wc).astype(mm_dtype)                     # (D, D) = Wc^T
    bc2 = bc.reshape(1, D).astype(jnp.float32)
    v2 = v.reshape(1, D).astype(jnp.float32)

    ref_isz = jnp.dtype(ref.dtype).itemsize
    e_isz = jnp.dtype(e_dtype).itemsize
    wct_isz = jnp.dtype(mm_dtype).itemsize

    # VMEM budget (conservative across v5e/v6e/v7x):
    #   resident = constant-index inputs, still double-buffered by the pipeline
    #              (TODO(synk): pipeline_mode=pl.Buffered(1) would halve this);
    #   per_l    = streaming bytes per L row (ref in, e out if requested,
    #              logits out), x2 for double buffering.
    total_budget = 24 << 20
    resident = 2 * (D * D * wct_isz + Bp * D * 4 + 2 * D * 4)
    per_l = 2 * Bp * D * ref_isz + 2 * Bp * 4
    if return_e:
        per_l += 2 * Bp * D * e_isz
    stream_budget = max(total_budget - resident, per_l)
    TL = _choose_tl(L, per_l, stream_budget)
    grid = (pl.cdiv(L, TL),)

    footprint = resident + TL * per_l
    vmem_limit = int(min(max(footprint + (4 << 20), 24 << 20), 56 << 20))

    kernel = functools.partial(_attention_kernel, use_tanh, float(C), return_e)

    out_shape = []
    out_specs = []
    if return_e:
        out_shape.append(jax.ShapeDtypeStruct((Bp, D, L), e_dtype))
        out_specs.append(pl.BlockSpec((Bp, D, TL), lambda l: (0, 0, l)))
    out_shape.append(jax.ShapeDtypeStruct((Bp, L), jnp.float32))
    out_specs.append(pl.BlockSpec((Bp, TL), lambda l: (0, l)))

    flops = 2 * L * Bp * D * D + 5 * L * Bp * D
    transcendentals = L * Bp * D + (L * Bp if use_tanh else 0)
    bytes_accessed = (L * Bp * D * ref_isz
                      + (L * Bp * D * e_isz if return_e else 0)
                      + D * D * wct_isz + Bp * D * 4 + 2 * D * 4
                      + L * Bp * 4)

    outs = pl.pallas_call(
        kernel,
        out_shape=tuple(out_shape),
        grid_spec=pltpu.PrefetchScalarGridSpec(
            num_scalar_prefetch=0,
            grid=grid,
            in_specs=[
                pl.BlockSpec((Bp, D), lambda l: (0, 0)),          # qp   (resident)
                pl.BlockSpec((TL, Bp, D), lambda l: (l, 0, 0)),   # ref  (streamed)
                pl.BlockSpec((D, D), lambda l: (0, 0)),           # Wc^T (resident)
                pl.BlockSpec((1, D), lambda l: (0, 0)),           # bc
                pl.BlockSpec((1, D), lambda l: (0, 0)),           # v
            ],
            out_specs=tuple(out_specs),
        ),
        compiler_params=pltpu.CompilerParams(
            dimension_semantics=("parallel",),
            vmem_limit_bytes=vmem_limit),
        cost_estimate=pl.CostEstimate(
            flops=flops, transcendentals=transcendentals,
            bytes_accessed=bytes_accessed),
    )(qp, ref, wct, bc2, v2)

    if return_e:
        e_out, logits = outs
    else:
        (logits,) = outs
        e_out = None

    if Bp != B:
        logits = logits[:B]
        if e_out is not None:
            e_out = e_out[:B]
    return e_out, logits


def _reference_forward(query, ref, wq, bq, wc, bc, v, *, use_tanh=False, C=10.0):
    # Pure-JAX reference mirroring the PyTorch module.
    ref_perm = jnp.transpose(ref, (1, 2, 0))                     # (B, D, L)
    q = query @ wq.T + bq                                        # (B, D)
    e = jnp.einsum("od,bdl->bol", wc, ref_perm,
                   precision=jax.lax.Precision.HIGHEST) + bc[None, :, None]
    u = jnp.einsum("d,bdl->bl", v, jnp.tanh(q[:, :, None] + e),
                   precision=jax.lax.Precision.HIGHEST)
    if use_tanh:
        u = C * jnp.tanh(u)
    return e, u


if __name__ == "__main__":
    B, D = 8, 128   # batch sublane-aligned, dim lane-dense
    key = jax.random.PRNGKey(0)
    k_q, k_r1, k_r2, k_wq, k_bq, k_wc, k_bc, k_v = jax.random.split(key, 8)

    query = jax.random.normal(k_q, (B, D), dtype=jnp.float32)

    bound = 1.0 / math.sqrt(D)
    wq = jax.random.uniform(k_wq, (D, D), minval=-bound, maxval=bound, dtype=jnp.float32)
    bq = jax.random.uniform(k_bq, (D,), minval=-bound, maxval=bound, dtype=jnp.float32)
    wc = jax.random.uniform(k_wc, (D, D), minval=-bound, maxval=bound, dtype=jnp.float32)
    bc = jax.random.uniform(k_bc, (D,), minval=-bound, maxval=bound, dtype=jnp.float32)
    v = jax.random.uniform(k_v, (D,), minval=-bound, maxval=bound, dtype=jnp.float32)

    # L=8   -> single block (TL == L) path.
    # L=256 -> tiled path (TL=128, grid=(2,), lane-dense 128-wide output blocks).
    for L, k_r in ((8, k_r1), (256, k_r2)):
        ref = jax.random.normal(k_r, (L, B, D), dtype=jnp.float32)

        for use_tanh in (False, True):
            e_out, logits_out = attention_forward(query, ref, wq, bq, wc, bc, v,
                                                  use_tanh=use_tanh, C=10.0)
            jax.block_until_ready((e_out, logits_out))
            e_ref, logits_ref = _reference_forward(query, ref, wq, bq, wc, bc, v,
                                                   use_tanh=use_tanh, C=10.0)
            assert e_out.shape == (B, D, L) and logits_out.shape == (B, L)
            assert jnp.allclose(e_out, e_ref, atol=2e-4, rtol=2e-4)
            assert jnp.allclose(logits_out, logits_ref, atol=2e-4, rtol=2e-4)

        # logits-only fast path (skips the large e writeback, ~halves HBM traffic
        # and gets a correspondingly larger TL).
        _, logits_only = attention_forward(query, ref, wq, bq, wc, bc, v,
                                           return_e=False)
        jax.block_until_ready(logits_only)
        _, logits_ref = _reference_forward(query, ref, wq, bq, wc, bc, v)
        assert jnp.allclose(logits_only, logits_ref, atol=2e-4, rtol=2e-4)

    print("KERNEL_OK")
</pallas_src>

<mosaic_0001>
module attributes {stable_mosaic.version = 11 : i64} {
  func.func @_attention_kernel(%arg0: i32, %arg1: memref<8x128xf32, #tpu.memory_space<vmem>>, %arg2: memref<8x8x128xf32, #tpu.memory_space<vmem>>, %arg3: memref<128x128xf32, #tpu.memory_space<vmem>>, %arg4: memref<1x128xf32, #tpu.memory_space<vmem>>, %arg5: memref<1x128xf32, #tpu.memory_space<vmem>>, %arg6: memref<8x128x8xf32, #tpu.memory_space<vmem>>, %arg7: memref<8x8xf32, #tpu.memory_space<vmem>>) attributes {dimension_semantics = [#tpu.dimension_semantics<parallel>], iteration_bounds = array<i64: 1>, scalar_prefetch = 0 : i64, scratch_operands = 0 : i64, tpu.core_type = #tpu.core_type<tc>, window_params = [{pipeline_mode = #tpu.pipeline_mode<synchronous>, transform_indices = @transform_0, window_bounds = array<i64: 8, 128>}, {transform_indices = @transform_1, window_bounds = array<i64: 8, 8, 128>}, {pipeline_mode = #tpu.pipeline_mode<synchronous>, transform_indices = @transform_2, window_bounds = array<i64: 128, 128>}, {pipeline_mode = #tpu.pipeline_mode<synchronous>, transform_indices = @transform_3, window_bounds = array<i64: 1, 128>}, {pipeline_mode = #tpu.pipeline_mode<synchronous>, transform_indices = @transform_4, window_bounds = array<i64: 1, 128>}, {transform_indices = @transform_5, window_bounds = array<i64: 8, 128, 8>}, {transform_indices = @transform_6, window_bounds = array<i64: 8, 8>}]} {
    %c0 = arith.constant 0 : index
    %c0_0 = arith.constant 0 : index
    %c0_1 = arith.constant 0 : index
    %0 = vector.load %arg2[%c0, %c0_0, %c0_1] : memref<8x8x128xf32, #tpu.memory_space<vmem>>, vector<8x8x128xf32>
    %1 = vector.shape_cast %0 : vector<8x8x128xf32> to vector<64x128xf32>
    %c0_2 = arith.constant 0 : index
    %c0_3 = arith.constant 0 : index
    %2 = vector.load %arg3[%c0_2, %c0_3] : memref<128x128xf32, #tpu.memory_space<vmem>>, vector<128x128xf32>
    %cst = arith.constant dense<0.000000e+00> : vector<64x128xf32>
    %3 = tpu.matmul %1, %2, %cst {dimension_numbers = #tpu.dot_dimension_numbers<[1], [0], [0], [1], [0, 0, 1, 1], [], []>} : vector<64x128xf32>, vector<128x128xf32>, vector<64x128xf32> -> vector<64x128xf32>
    %c0_4 = arith.constant 0 : index
    %c0_5 = arith.constant 0 : index
    %4 = vector.load %arg4[%c0_4, %c0_5] : memref<1x128xf32, #tpu.memory_space<vmem>>, vector<1x128xf32>
    %5 = vector.broadcast %4 : vector<1x128xf32> to vector<64x128xf32>
    %6 = arith.addf %3, %5 : vector<64x128xf32>
    %7 = vector.shape_cast %6 : vector<64x128xf32> to vector<8x8x128xf32>
    %c0_6 = arith.constant 0 : index
    %c0_7 = arith.constant 0 : index
    %8 = vector.load %arg1[%c0_6, %c0_7] : memref<8x128xf32, #tpu.memory_space<vmem>>, vector<8x128xf32>
    %9 = vector.shape_cast %8 : vector<8x128xf32> to vector<1x8x128xf32>
    %10 = vector.broadcast %9 : vector<1x8x128xf32> to vector<8x8x128xf32>
    %11 = arith.addf %7, %10 : vector<8x8x128xf32>
    %12 = math.tanh %11 : vector<8x8x128xf32>
    %c0_8 = arith.constant 0 : index
    %c0_9 = arith.constant 0 : index
    %13 = vector.load %arg5[%c0_8, %c0_9] : memref<1x128xf32, #tpu.memory_space<vmem>>, vector<1x128xf32>
    %14 = vector.shape_cast %13 : vector<1x128xf32> to vector<1x1x128xf32>
    %15 = vector.broadcast %14 : vector<1x1x128xf32> to vector<8x8x128xf32>
    %16 = arith.mulf %12, %15 : vector<8x8x128xf32>
    %cst_10 = arith.constant dense<0.000000e+00> : vector<8x8xf32>
    %17 = vector.multi_reduction <add>, %16, %cst_10 [2] : vector<8x8x128xf32> to vector<8x8xf32>
    %18 = vector.extract_strided_slice %7 {offsets = [0, 0, 0], sizes = [8, 1, 128], strides = [1, 1, 1]} : vector<8x8x128xf32> to vector<8x1x128xf32>
    %19 = vector.shape_cast %18 : vector<8x1x128xf32> to vector<8x128xf32>
    %20 = tpu.transpose %19, [1, 0] : vector<8x128xf32> -> vector<128x8xf32>
    %c0_11 = arith.constant 0 : index
    %c0_12 = arith.constant 0 : index
    %c0_13 = arith.constant 0 : index
    %21 = vector.load %arg6[%c0_11, %c0_12, %c0_13] : memref<8x128x8xf32, #tpu.memory_space<vmem>>, vector<1x128x8xf32>
    %22 = vector.shape_cast %21 : vector<1x128x8xf32> to vector<128x8xf32>
    %23 = vector.shape_cast %20 : vector<128x8xf32> to vector<1x128x8xf32>
    tpu.vector_store %arg6[%c0_11, %c0_12, %c0_13], %23 {strides = array<i32>} : memref<8x128x8xf32, #tpu.memory_space<vmem>>, vector<1x128x8xf32>,
    %24 = vector.extract_strided_slice %7 {offsets = [0, 1, 0], sizes = [8, 1, 128], strides = [1, 1, 1]} : vector<8x8x128xf32> to vector<8x1x128xf32>
    %25 = vector.shape_cast %24 : vector<8x1x128xf32> to vector<8x128xf32>
    %26 = tpu.transpose %25, [1, 0] : vector<8x128xf32> -> vector<128x8xf32>
    %c1 = arith.constant 1 : index
    %c0_14 = arith.constant 0 : index
    %c0_15 = arith.constant 0 : index
    %27 = vector.load %arg6[%c1, %c0_14, %c0_15] : memref<8x128x8xf32, #tpu.memory_space<vmem>>, vector<1x128x8xf32>
    %28 = vector.shape_cast %27 : vector<1x128x8xf32> to vector<128x8xf32>
    %29 = vector.shape_cast %26 : vector<128x8xf32> to vector<1x128x8xf32>
    tpu.vector_store %arg6[%c1, %c0_14, %c0_15], %29 {strides = array<i32>} : memref<8x128x8xf32, #tpu.memory_space<vmem>>, vector<1x128x8xf32>,
    %30 = vector.extract_strided_slice %7 {offsets = [0, 2, 0], sizes = [8, 1, 128], strides = [1, 1, 1]} : vector<8x8x128xf32> to vector<8x1x128xf32>
    %31 = vector.shape_cast %30 : vector<8x1x128xf32> to vector<8x128xf32>
    %32 = tpu.transpose %31, [1, 0] : vector<8x128xf32> -> vector<128x8xf32>
    %c2 = arith.constant 2 : index
    %c0_16 = arith.constant 0 : index
    %c0_17 = arith.constant 0 : index
    %33 = vector.load %arg6[%c2, %c0_16, %c0_17] : memref<8x128x8xf32, #tpu.memory_space<vmem>>, vector<1x128x8xf32>
    %34 = vector.shape_cast %33 : vector<1x128x8xf32> to vector<128x8xf32>
    %35 = vector.shape_cast %32 : vector<128x8xf32> to vector<1x128x8xf32>
    tpu.vector_store %arg6[%c2, %c0_16, %c0_17], %35 {strides = array<i32>} : memref<8x128x8xf32, #tpu.memory_space<vmem>>, vector<1x128x8xf32>,
    %36 = vector.extract_strided_slice %7 {offsets = [0, 3, 0], sizes = [8, 1, 128], strides = [1, 1, 1]} : vector<8x8x128xf32> to vector<8x1x128xf32>
    %37 = vector.shape_cast %36 : vector<8x1x128xf32> to vector<8x128xf32>
    %38 = tpu.transpose %37, [1, 0] : vector<8x128xf32> -> vector<128x8xf32>
    %c3 = arith.constant 3 : index
    %c0_18 = arith.constant 0 : index
    %c0_19 = arith.constant 0 : index
    %39 = vector.load %arg6[%c3, %c0_18, %c0_19] : memref<8x128x8xf32, #tpu.memory_space<vmem>>, vector<1x128x8xf32>
    %40 = vector.shape_cast %39 : vector<1x128x8xf32> to vector<128x8xf32>
    %41 = vector.shape_cast %38 : vector<128x8xf32> to vector<1x128x8xf32>
    tpu.vector_store %arg6[%c3, %c0_18, %c0_19], %41 {strides = array<i32>} : memref<8x128x8xf32, #tpu.memory_space<vmem>>, vector<1x128x8xf32>,
    %42 = vector.extract_strided_slice %7 {offsets = [0, 4, 0], sizes = [8, 1, 128], strides = [1, 1, 1]} : vector<8x8x128xf32> to vector<8x1x128xf32>
    %43 = vector.shape_cast %42 : vector<8x1x128xf32> to vector<8x128xf32>
    %44 = tpu.transpose %43, [1, 0] : vector<8x128xf32> -> vector<128x8xf32>
    %c4 = arith.constant 4 : index
    %c0_20 = arith.constant 0 : index
    %c0_21 = arith.constant 0 : index
    %45 = vector.load %arg6[%c4, %c0_20, %c0_21] : memref<8x128x8xf32, #tpu.memory_space<vmem>>, vector<1x128x8xf32>
    %46 = vector.shape_cast %45 : vector<1x128x8xf32> to vector<128x8xf32>
    %47 = vector.shape_cast %44 : vector<128x8xf32> to vector<1x128x8xf32>
    tpu.vector_store %arg6[%c4, %c0_20, %c0_21], %47 {strides = array<i32>} : memref<8x128x8xf32, #tpu.memory_space<vmem>>, vector<1x128x8xf32>,
    %48 = vector.extract_strided_slice %7 {offsets = [0, 5, 0], sizes = [8, 1, 128], strides = [1, 1, 1]} : vector<8x8x128xf32> to vector<8x1x128xf32>
    %49 = vector.shape_cast %48 : vector<8x1x128xf32> to vector<8x128xf32>
    %50 = tpu.transpose %49, [1, 0] : vector<8x128xf32> -> vector<128x8xf32>
    %c5 = arith.constant 5 : index
    %c0_22 = arith.constant 0 : index
    %c0_23 = arith.constant 0 : index
    %51 = vector.load %arg6[%c5, %c0_22, %c0_23] : memref<8x128x8xf32, #tpu.memory_space<vmem>>, vector<1x128x8xf32>
    %52 = vector.shape_cast %51 : vector<1x128x8xf32> to vector<128x8xf32>
    %53 = vector.shape_cast %50 : vector<128x8xf32> to vector<1x128x8xf32>
    tpu.vector_store %arg6[%c5, %c0_22, %c0_23], %53 {strides = array<i32>} : memref<8x128x8xf32, #tpu.memory_space<vmem>>, vector<1x128x8xf32>,
    %54 = vector.extract_strided_slice %7 {offsets = [0, 6, 0], sizes = [8, 1, 128], strides = [1, 1, 1]} : vector<8x8x128xf32> to vector<8x1x128xf32>
    %55 = vector.shape_cast %54 : vector<8x1x128xf32> to vector<8x128xf32>
    %56 = tpu.transpose %55, [1, 0] : vector<8x128xf32> -> vector<128x8xf32>
    %c6 = arith.constant 6 : index
    %c0_24 = arith.constant 0 : index
    %c0_25 = arith.constant 0 : index
    %57 = vector.load %arg6[%c6, %c0_24, %c0_25] : memref<8x128x8xf32, #tpu.memory_space<vmem>>, vector<1x128x8xf32>
    %58 = vector.shape_cast %57 : vector<1x128x8xf32> to vector<128x8xf32>
    %59 = vector.shape_cast %56 : vector<128x8xf32> to vector<1x128x8xf32>
    tpu.vector_store %arg6[%c6, %c0_24, %c0_25], %59 {strides = array<i32>} : memref<8x128x8xf32, #tpu.memory_space<vmem>>, vector<1x128x8xf32>,
    %60 = vector.extract_strided_slice %7 {offsets = [0, 7, 0], sizes = [8, 1, 128], strides = [1, 1, 1]} : vector<8x8x128xf32> to vector<8x1x128xf32>
    %61 = vector.shape_cast %60 : vector<8x1x128xf32> to vector<8x128xf32>
    %62 = tpu.transpose %61, [1, 0] : vector<8x128xf32> -> vector<128x8xf32>
    %c7 = arith.constant 7 : index
    %c0_26 = arith.constant 0 : index
    %c0_27 = arith.constant 0 : index
    %63 = vector.load %arg6[%c7, %c0_26, %c0_27] : memref<8x128x8xf32, #tpu.memory_space<vmem>>, vector<1x128x8xf32>
    %64 = vector.shape_cast %63 : vector<1x128x8xf32> to vector<128x8xf32>
    %65 = vector.shape_cast %62 : vector<128x8xf32> to vector<1x128x8xf32>
    tpu.vector_store %arg6[%c7, %c0_26, %c0_27], %65 {strides = array<i32>} : memref<8x128x8xf32, #tpu.memory_space<vmem>>, vector<1x128x8xf32>,
    %66 = tpu.transpose %17, [1, 0] : vector<8x8xf32> -> vector<8x8xf32>
    %c0_28 = arith.constant 0 : index
    %c0_29 = arith.constant 0 : index
    %67 = vector.load %arg7[%c0_28, %c0_29] : memref<8x8xf32, #tpu.memory_space<vmem>>, vector<8x8xf32>
    tpu.vector_store %arg7[%c0_28, %c0_29], %66 {strides = array<i32>} : memref<8x8xf32, #tpu.memory_space<vmem>>, vector<8x8xf32>,
    return
  }
  func.func @transform_0(%arg0: i32) -> (i32, i32) {
    %c0_i32 = arith.constant 0 : i32
    %c0_i32_0 = arith.constant 0 : i32
    %c0_i32_1 = arith.constant 0 : i32
    return %c0_i32, %c0_i32_0 : i32, i32
  }
  func.func @transform_1(%arg0: i32) -> (i32, i32, i32) {
    %c0_i32 = arith.constant 0 : i32
    %c0_i32_0 = arith.constant 0 : i32
    %c0_i32_1 = arith.constant 0 : i32
    return %arg0, %c0_i32, %c0_i32_0 : i32, i32, i32
  }
  func.func @transform_2(%arg0: i32) -> (i32, i32) {
    %c0_i32 = arith.constant 0 : i32
    %c0_i32_0 = arith.constant 0 : i32
    %c0_i32_1 = arith.constant 0 : i32
    return %c0_i32, %c0_i32_0 : i32, i32
  }
  func.func @transform_3(%arg0: i32) -> (i32, i32) {
    %c0_i32 = arith.constant 0 : i32
    %c0_i32_0 = arith.constant 0 : i32
    %c0_i32_1 = arith.constant 0 : i32
    return %c0_i32, %c0_i32_0 : i32, i32
  }
  func.func @transform_4(%arg0: i32) -> (i32, i32) {
    %c0_i32 = arith.constant 0 : i32
    %c0_i32_0 = arith.constant 0 : i32
    %c0_i32_1 = arith.constant 0 : i32
    return %c0_i32, %c0_i32_0 : i32, i32
  }
  func.func @transform_5(%arg0: i32) -> (i32, i32, i32) {
    %c0_i32 = arith.constant 0 : i32
    %c0_i32_0 = arith.constant 0 : i32
    %c0_i32_1 = arith.constant 0 : i32
    return %c0_i32, %c0_i32_0, %arg0 : i32, i32, i32
  }
  func.func @transform_6(%arg0: i32) -> (i32, i32) {
    %c0_i32 = arith.constant 0 : i32
    %c0_i32_0 = arith.constant 0 : i32
    return %c0_i32, %arg0 : i32, i32
  }
}

</mosaic_0001>

<llo_original>
// kernel: tpu_custom_call.1
$region0: #{tpu_custom_call.1}
  #allocation0 [shape = 'u32[]', space=smem, size = 0x4, offset = 0x4, fixed_abs, tag = 'smem constant byte address 0x4 - core index']
  #allocation1 [shape = 'u32[144,128]{1,0:T(1,128)}', space=vmem, size = 0x12000, scoped, tag = 'internal scratch']
  %s0 = inlined_call_operand.hbm [shape: f32[8,128], index: 0, kind: input, shape index: {}]
  %s1 = inlined_call_operand.hbm [shape: f32[8,8,128], index: 1, kind: input, shape index: {}]
  %s2 = inlined_call_operand.hbm [shape: f32[128,128], index: 2, kind: input, shape index: {}]
  %s3 = inlined_call_operand.vmem [shape: f32[1,128], index: 3, kind: input, shape index: {}]
  %s4 = inlined_call_operand.vmem [shape: f32[1,128], index: 4, kind: input, shape index: {}]
  %s5 = inlined_call_operand.vmem [shape: f32[8,128,8], index: 5, kind: output, shape index: {0}]
  %s6 = inlined_call_operand.hbm [shape: f32[8,8], index: 6, kind: output, shape index: {1}]
  %7 = xla_tuple %s5, %s6
  %s8 = sld [smem:[#allocation0]]
  $region50: #{tpu_custom_call.1} parent=0
    _
  %s10 = ssub.s32 1, %s8
  %s11 = scalar_select 0, %s10, %s8
  $region1: #{tpu_custom_call.1} parent=0
    #allocation2 [shape = 'u8[4096]{0}', space=vmem, size = 0x1000, scoped, tag = 'input window, operand 0, single buffered']
    #allocation3 [shape = 's32[1]{0}', space=sflag, size = 0x4, scoped, tag = 'scoped memory for tpu_custom_call.1']
    #allocation4 [shape = 's32[1]{0}', space=sflag, size = 0x4, scoped, tag = 'scoped memory for tpu_custom_call.1']
    #allocation5 [shape = 'u8[32768]{0}', space=vmem, size = 0x8000, scoped, tag = 'input window, operand 1, single buffered']
    #allocation6 [shape = 's32[1]{0}', space=sflag, size = 0x4, scoped, tag = 'scoped memory for tpu_custom_call.1']
    #allocation7 [shape = 'u8[65536]{0}', space=vmem, size = 0x10000, scoped, tag = 'input window, operand 2, single buffered']
    #allocation8 [shape = 'u8[4096]{0}', space=vmem, size = 0x1000, scoped, tag = 'output window, operand 1, single buffered']
    %12 = vsyncpa [#allocation3], 0
    %13 = vsyncpa [#allocation6], 0
    %14 = vsyncpa [#allocation4], 0
    // Predicated region
    $region2: #{tpu_custom_call.1} parent=1 // pred_check
      _
    $region3: #{tpu_custom_call.1} parent=1 // pred_check_branch
      %16 = sbr.rel (0) target = $region5
    $region4: #{tpu_custom_call.1} parent=1 // pred_region
      %s18 = ssub.s32 128, 128
      %19 = vsyncadd [#allocation3], %s18
      %s21 = sshll.u32 [#allocation2], 4
      %s22 = int_to_ptr.vmem [resolvable:$true] %s21
      %24 = dma.hbm_to_vmem [thread:$0]  %s0, 128, %s22, [#allocation3]
    $region5: #{tpu_custom_call.1} parent=1 // pred_fallthru
      _
    // Predicated region
    $region6: #{tpu_custom_call.1} parent=1 // pred_check
      _
    $region7: #{tpu_custom_call.1} parent=1 // pred_check_branch
      %26 = sbr.rel (0) target = $region9
    $region8: #{tpu_custom_call.1} parent=1 // pred_region
      %s28 = ssub.s32 1024, 1024
      %29 = vsyncadd [#allocation6], %s28
      %s30 = sshll.u32 [#allocation5], 4
      %s31 = int_to_ptr.vmem [resolvable:$true] %s30
      %36 = dma.hbm_to_vmem [thread:$0]  %s1, 1024, %s31, [#allocation6], 128, 128, 8
    $region9: #{tpu_custom_call.1} parent=1 // pred_fallthru
      _
    // Predicated region
    $region10: #{tpu_custom_call.1} parent=1 // pred_check
      _
    $region11: #{tpu_custom_call.1} parent=1 // pred_check_branch
      %38 = sbr.rel (0) target = $region13
    $region12: #{tpu_custom_call.1} parent=1 // pred_region
      %s40 = ssub.s32 2048, 2048
      %41 = vsyncadd [#allocation6], %s40
      %s42 = sshll.u32 [#allocation7], 4
      %s43 = int_to_ptr.vmem [resolvable:$true] %s42
      %48 = dma.hbm_to_vmem [thread:$0]  %s2, 2048, %s43, [#allocation6], 128, 128, 8
    $region13: #{tpu_custom_call.1} parent=1 // pred_fallthru
      _
    // Predicated region
    $region14: #{tpu_custom_call.1} parent=1 // pred_check
      _
    $region15: #{tpu_custom_call.1} parent=1 // pred_check_branch
      %50 = sbr.rel (0) target = $region17
    $region16: #{tpu_custom_call.1} parent=1 // pred_region
      _
    $region17: #{tpu_custom_call.1} parent=1 // pred_fallthru
      _
    // Predicated region
    $region18: #{tpu_custom_call.1} parent=1 // pred_check
      _
    $region19: #{tpu_custom_call.1} parent=1 // pred_check_branch
      %52 = sbr.rel (0) target = $region21
    $region20: #{tpu_custom_call.1} parent=1 // pred_region
      _
    $region21: #{tpu_custom_call.1} parent=1 // pred_fallthru
      _
    // Predicated region
    $region22: #{tpu_custom_call.1} parent=1 // pred_check
      _
    $region23: #{tpu_custom_call.1} parent=1 // pred_check_branch
      %54 = sbr.rel (0) target = $region25
    $region24: #{tpu_custom_call.1} parent=1 // pred_region
      %55 = dma.done [#allocation3], 128
    $region25: #{tpu_custom_call.1} parent=1 // pred_fallthru
      _
    // Predicated region
    $region26: #{tpu_custom_call.1} parent=1 // pred_check
      _
    $region27: #{tpu_custom_call.1} parent=1 // pred_check_branch
      %57 = sbr.rel (0) target = $region29
    $region28: #{tpu_custom_call.1} parent=1 // pred_region
      %58 = dma.done [#allocation6], 1024
    $region29: #{tpu_custom_call.1} parent=1 // pred_fallthru
      _
    // Predicated region
    $region30: #{tpu_custom_call.1} parent=1 // pred_check
      _
    $region31: #{tpu_custom_call.1} parent=1 // pred_check_branch
      %60 = sbr.rel (0) target = $region33
    $region32: #{tpu_custom_call.1} parent=1 // pred_region
      %61 = dma.done [#allocation6], 2048
    $region33: #{tpu_custom_call.1} parent=1 // pred_fallthru
      _
    %v62 = vld [vmem:[#allocation5] sm:$0xff]
    %v63 = vld [vmem:[#allocation5 + $0x8] sm:$0xff]
    %v64 = vld [vmem:[#allocation5 + $0x10] sm:$0xff]
    %v65 = vld [vmem:[#allocation5 + $0x18] sm:$0xff]
    %v66 = vld [vmem:[#allocation5 + $0x20] sm:$0xff]
    %v67 = vld [vmem:[#allocation5 + $0x28] sm:$0xff]
    %v68 = vld [vmem:[#allocation5 + $0x30] sm:$0xff]
    %v69 = vld [vmem:[#allocation5 + $0x38] sm:$0xff]
    %v70 = vld [vmem:[#allocation7] sm:$0xff]
    %v71 = vld [vmem:[#allocation7 + $0x8] sm:$0xff]
    %v72 = vld [vmem:[#allocation7 + $0x10] sm:$0xff]
    %v73 = vld [vmem:[#allocation7 + $0x18] sm:$0xff]
    %v74 = vld [vmem:[#allocation7 + $0x20] sm:$0xff]
    %v75 = vld [vmem:[#allocation7 + $0x28] sm:$0xff]
    %v76 = vld [vmem:[#allocation7 + $0x30] sm:$0xff]
    %v77 = vld [vmem:[#allocation7 + $0x38] sm:$0xff]
    %v78 = vld [vmem:[#allocation7 + $0x40] sm:$0xff]
    %v79 = vld [vmem:[#allocation7 + $0x48] sm:$0xff]
    %v80 = vld [vmem:[#allocation7 + $0x50] sm:$0xff]
    %v81 = vld [vmem:[#allocation7 + $0x58] sm:$0xff]
    %v82 = vld [vmem:[#allocation7 + $0x60] sm:$0xff]
    %v83 = vld [vmem:[#allocation7 + $0x68] sm:$0xff]
    %v84 = vld [vmem:[#allocation7 + $0x70] sm:$0xff]
    %v85 = vld [vmem:[#allocation7 + $0x78] sm:$0xff]
    %v86 = vld [vmem:[%s3] sm:$0x1]
    %v88 = vlaneseq
    %v89 = vshrl.u32 %v88, 7
    %v90 = vsub.s32 0, %v89
    %v91 = vrot.slane %v86, %v90
    %93 = vmatprep.subr.mxu0 0.0
    %94 = vmatpush1.msra.mxu0 %v85
    %95 = vmatprep.subr.mxu0 0.0
    %96 = vmatpush1.msra.mxu0 %v84
    %97 = vmatprep.subr.mxu0 0.0
    %98 = vmatpush1.msra.mxu0 %v83
    %99 = vmatprep.subr.mxu0 0.0
    %100 = vmatpush1.msra.mxu0 %v82
    %101 = vmatprep.subr.mxu0 0.0
    %102 = vmatpush1.msra.mxu0 %v81
    %103 = vmatprep.subr.mxu0 0.0
    %104 = vmatpush1.msra.mxu0 %v80
    %105 = vmatprep.subr.mxu0 0.0
    %106 = vmatpush1.msra.mxu0 %v79
    %107 = vmatprep.subr.mxu0 0.0
    %108 = vmatpush1.msra.mxu0 %v78
    %109 = vmatprep.subr.mxu0 0.0
    %110 = vmatpush1.msra.mxu0 %v77
    %111 = vmatprep.subr.mxu0 0.0
    %112 = vmatpush1.msra.mxu0 %v76
    %113 = vmatprep.subr.mxu0 0.0
    %114 = vmatpush1.msra.mxu0 %v75
    %115 = vmatprep.subr.mxu0 0.0
    %116 = vmatpush1.msra.mxu0 %v74
    %117 = vmatprep.subr.mxu0 0.0
    %118 = vmatpush1.msra.mxu0 %v73
    %119 = vmatprep.subr.mxu0 0.0
    %120 = vmatpush1.msra.mxu0 %v72
    %121 = vmatprep.subr.mxu0 0.0
    %122 = vmatpush1.msra.mxu0 %v71
    %123 = vmatprep.subr.mxu0 0.0
    %124 = vmatpush1.msra.mxu0 %v70
    %125 = vmatprep.subr.mxu0 0.0
    %126 = vmatpush2.msra.mxu0 0.0
    %127 = vmatprep.subr.mxu0 0.0
    %128 = vmatpush2.msra.mxu0 0.0
    %129 = vmatprep.subr.mxu0 0.0
    %130 = vmatpush2.msra.mxu0 0.0
    %131 = vmatprep.subr.mxu0 0.0
    %132 = vmatpush2.msra.mxu0 0.0
    %133 = vmatprep.subr.mxu0 0.0
    %134 = vmatpush2.msra.mxu0 0.0
    %135 = vmatprep.subr.mxu0 0.0
    %136 = vmatpush2.msra.mxu0 0.0
    %137 = vmatprep.subr.mxu0 0.0
    %138 = vmatpush2.msra.mxu0 0.0
    %139 = vmatprep.subr.mxu0 0.0
    %140 = vmatpush2.msra.mxu0 0.0
    %141 = vmatprep.subr.mxu0 0.0
    %142 = vmatpush2.msra.mxu0 0.0
    %143 = vmatprep.subr.mxu0 0.0
    %144 = vmatpush2.msra.mxu0 0.0
    %145 = vmatprep.subr.mxu0 0.0
    %146 = vmatpush2.msra.mxu0 0.0
    %147 = vmatprep.subr.mxu0 0.0
    %148 = vmatpush2.msra.mxu0 0.0
    %149 = vmatprep.subr.mxu0 0.0
    %150 = vmatpush2.msra.mxu0 0.0
    %151 = vmatprep.subr.mxu0 0.0
    %152 = vmatpush2.msra.mxu0 0.0
    %153 = vmatprep.subr.mxu0 0.0
    %154 = vmatpush2.msra.mxu0 0.0
    %155 = vmatprep.subr.mxu0 0.0
    %156 = vmatpush2.msra.mxu0 0.0
    %157 = vmatprep.mubr.f32.mxu0 0.0
    %158 = vmatmul.mubr.f32.gmra.mxu0 %v62
    %v159 = vpop.f32.mrf.mxu0
    %v160 = vadd.f32 %v91, %v159
    %v161 = vpop.f32.mrf.mxu0
    %162 = vmatprep.mubr.f32.mxu0 0.0
    %163 = vmatmul.mubr.f32.gmra.mxu0 %v63
    %v164 = vpop.f32.mrf.mxu0
    %v165 = vadd.f32 %v91, %v164
    %v166 = vpop.f32.mrf.mxu0
    %167 = vmatprep.mubr.f32.mxu0 0.0
    %168 = vmatmul.mubr.f32.gmra.mxu0 %v64
    %v169 = vpop.f32.mrf.mxu0
    %v170 = vadd.f32 %v91, %v169
    %v171 = vpop.f32.mrf.mxu0
    %172 = vmatprep.mubr.f32.mxu0 0.0
    %173 = vmatmul.mubr.f32.gmra.mxu0 %v65
    %v174 = vpop.f32.mrf.mxu0
    %v175 = vadd.f32 %v91, %v174
    %v176 = vpop.f32.mrf.mxu0
    %177 = vmatprep.mubr.f32.mxu0 0.0
    %178 = vmatmul.mubr.f32.gmra.mxu0 %v66
    %v179 = vpop.f32.mrf.mxu0
    %v180 = vadd.f32 %v91, %v179
    %v181 = vpop.f32.mrf.mxu0
    %182 = vmatprep.mubr.f32.mxu0 0.0
    %183 = vmatmul.mubr.f32.gmra.mxu0 %v67
    %v184 = vpop.f32.mrf.mxu0
    %v185 = vadd.f32 %v91, %v184
    %v186 = vpop.f32.mrf.mxu0
    %187 = vmatprep.mubr.f32.mxu0 0.0
    %188 = vmatmul.mubr.f32.gmra.mxu0 %v68
    %v189 = vpop.f32.mrf.mxu0
    %v190 = vadd.f32 %v91, %v189
    %v191 = vpop.f32.mrf.mxu0
    %192 = vmatprep.mubr.f32.mxu0 0.0
    %193 = vmatmul.mubr.f32.gmra.mxu0 %v69
    %v194 = vpop.f32.mrf.mxu0
    %v195 = vadd.f32 %v91, %v194
    %v196 = vpop.f32.mrf.mxu0
    %197 = vdwg.mxu0
    %v198 = vld [vmem:[#allocation2] sm:$0xff]
    %v199 = vadd.f32 %v160, %v198
    %v200 = vadd.f32 %v165, %v198
    %v201 = vadd.f32 %v170, %v198
    %v202 = vadd.f32 %v175, %v198
    %v203 = vadd.f32 %v180, %v198
    %v204 = vadd.f32 %v185, %v198
    %v205 = vadd.f32 %v190, %v198
    %v206 = vadd.f32 %v195, %v198
    %v207 = vtanh.pop %v199
    %v208 = vtanh.pop %v200
    %v209 = vtanh.pop %v201
    %v210 = vtanh.pop %v202
    %v211 = vtanh.pop %v203
    %v212 = vtanh.pop %v204
    %v213 = vtanh.pop %v205
    %v214 = vtanh.pop %v206
    %v215 = vld [vmem:[%s4] sm:$0x1]
    %v217 = vlaneseq
    %v218 = vshrl.u32 %v217, 7
    %v219 = vsub.s32 0, %v218
    %v220 = vrot.slane %v215, %v219
    %v222 = vmul.f32 %v207, %v220
    %v223 = vmul.f32 %v208, %v220
    %v224 = vmul.f32 %v209, %v220
    %v225 = vmul.f32 %v210, %v220
    %v226 = vmul.f32 %v211, %v220
    %v227 = vmul.f32 %v212, %v220
    %v228 = vmul.f32 %v213, %v220
    %v229 = vmul.f32 %v214, %v220
    %230 = vadd.xlane.f32.xlu0 %v222
    %v231 = vpop.xlane.xlu0 %230
    %232 = vadd.xlane.f32.xlu0 %v223
    %v233 = vpop.xlane.xlu0 %232
    %234 = vadd.xlane.f32.xlu0 %v224
    %v235 = vpop.xlane.xlu0 %234
    %236 = vadd.xlane.f32.xlu0 %v225
    %v237 = vpop.xlane.xlu0 %236
    %238 = vadd.xlane.f32.xlu0 %v226
    %v239 = vpop.xlane.xlu0 %238
    %240 = vadd.xlane.f32.xlu0 %v227
    %v241 = vpop.xlane.xlu0 %240
    %242 = vadd.xlane.f32.xlu0 %v228
    %v243 = vpop.xlane.xlu0 %242
    %244 = vadd.xlane.f32.xlu0 %v229
    %v245 = vpop.xlane.xlu0 %244
    %v254 = vrot.slane %v165, 7
    %vm255 = vcmask 1041409
    %v256 = vsel %vm255, %v254, %v160
    %v257 = vrot.slane %v170, 6
    %vm258 = vcmask 1042434
    %v259 = vsel %vm258, %v257, %v256
    %v260 = vrot.slane %v175, 5
    %vm261 = vcmask 1043459
    %v262 = vsel %vm261, %v260, %v259
    %v263 = vrot.slane %v180, 4
    %vm264 = vcmask 1044484
    %v265 = vsel %vm264, %v263, %v262
    %v266 = vrot.slane %v185, 3
    %vm267 = vcmask 1045509
    %v268 = vsel %vm267, %v266, %v265
    %v269 = vrot.slane %v190, 2
    %vm270 = vcmask 1046534
    %v271 = vsel %vm270, %v269, %v268
    %v272 = vrot.slane %v195, 1
    %vm273 = vcmask 1047559
    %v274 = vsel %vm273, %v272, %v271
    %276 = vxpose.xlu0.b32.start [1/16] %v274, 128
    %277 = vxpose.xlu0.b32.cont [2/16] 0.0, 128
    %278 = vxpose.xlu0.b32.cont [3/16] 0.0, 128
    %279 = vxpose.xlu0.b32.cont [4/16] 0.0, 128
    %280 = vxpose.xlu0.b32.cont [5/16] 0.0, 128
    %281 = vxpose.xlu0.b32.cont [6/16] 0.0, 128
    %282 = vxpose.xlu0.b32.cont [7/16] 0.0, 128
    %283 = vxpose.xlu0.b32.cont [8/16] 0.0, 128
    %284 = vxpose.xlu0.b32.cont [9/16] 0.0, 128
    %285 = vxpose.xlu0.b32.cont [10/16] 0.0, 128
    %286 = vxpose.xlu0.b32.cont [11/16] 0.0, 128
    %287 = vxpose.xlu0.b32.cont [12/16] 0.0, 128
    %288 = vxpose.xlu0.b32.cont [13/16] 0.0, 128
    %289 = vxpose.xlu0.b32.cont [14/16] 0.0, 128
    %290 = vxpose.xlu0.b32.cont [15/16] 0.0, 128
    %291 = vxpose.xlu0.b32.end [16/16] 0.0, 128
    %v292 = vpop.trf.xlu0
    %v293 = vpop.trf.xlu0
    %v294 = vpop.trf.xlu0
    %v295 = vpop.trf.xlu0
    %v296 = vpop.trf.xlu0
    %v297 = vpop.trf.xlu0
    %v298 = vpop.trf.xlu0
    %v299 = vpop.trf.xlu0
    %v300 = vpop.trf.xlu0
    %v301 = vpop.trf.xlu0
    %v302 = vpop.trf.xlu0
    %v303 = vpop.trf.xlu0
    %v304 = vpop.trf.xlu0
    %v305 = vpop.trf.xlu0
    %v306 = vpop.trf.xlu0
    %v307 = vpop.trf.xlu0
    %vm308 = vcmask 64512
    %309 = vst.msk [vmem:[%s5] sm:$0xff] %vm308, %v292
    %310 = vst.msk [vmem:[%s5 + $0x8] sm:$0xff] %vm308, %v293
    %311 = vst.msk [vmem:[%s5 + $0x10] sm:$0xff] %vm308, %v294
    %312 = vst.msk [vmem:[%s5 + $0x18] sm:$0xff] %vm308, %v295
    %313 = vst.msk [vmem:[%s5 + $0x20] sm:$0xff] %vm308, %v296
    %314 = vst.msk [vmem:[%s5 + $0x28] sm:$0xff] %vm308, %v297
    %315 = vst.msk [vmem:[%s5 + $0x30] sm:$0xff] %vm308, %v298
    %316 = vst.msk [vmem:[%s5 + $0x38] sm:$0xff] %vm308, %v299
    %317 = vst.msk [vmem:[%s5 + $0x40] sm:$0xff] %vm308, %v300
    %318 = vst.msk [vmem:[%s5 + $0x48] sm:$0xff] %vm308, %v301
    %319 = vst.msk [vmem:[%s5 + $0x50] sm:$0xff] %vm308, %v302
    %320 = vst.msk [vmem:[%s5 + $0x58] sm:$0xff] %vm308, %v303
    %321 = vst.msk [vmem:[%s5 + $0x60] sm:$0xff] %vm308, %v304
    %322 = vst.msk [vmem:[%s5 + $0x68] sm:$0xff] %vm308, %v305
    %323 = vst.msk [vmem:[%s5 + $0x70] sm:$0xff] %vm308, %v306
    %324 = vst.msk [vmem:[%s5 + $0x78] sm:$0xff] %vm308, %v307
    %v325 = vrot.slane %v160, 1
    %v326 = vsel %vm255, %v165, %v325
    %v327 = vrot.slane %v170, 7
    %v328 = vsel %vm258, %v327, %v326
    %v329 = vrot.slane %v175, 6
    %v330 = vsel %vm261, %v329, %v328
    %v331 = vrot.slane %v180, 5
    %v332 = vsel %vm264, %v331, %v330
    %v333 = vrot.slane %v185, 4
    %v334 = vsel %vm267, %v333, %v332
    %v335 = vrot.slane %v190, 3
    %v336 = vsel %vm270, %v335, %v334
    %v337 = vrot.slane %v195, 2
    %v338 = vsel %vm273, %v337, %v336
    %340 = vxpose.xlu0.b32.start [1/16] %v338, 128
    %341 = vxpose.xlu0.b32.cont [2/16] 0.0, 128
    %342 = vxpose.xlu0.b32.cont [3/16] 0.0, 128
    %343 = vxpose.xlu0.b32.cont [4/16] 0.0, 128
    %344 = vxpose.xlu0.b32.cont [5/16] 0.0, 128
    %345 = vxpose.xlu0.b32.cont [6/16] 0.0, 128
    %346 = vxpose.xlu0.b32.cont [7/16] 0.0, 128
    %347 = vxpose.xlu0.b32.cont [8/16] 0.0, 128
    %348 = vxpose.xlu0.b32.cont [9/16] 0.0, 128
    %349 = vxpose.xlu0.b32.cont [10/16] 0.0, 128
    %350 = vxpose.xlu0.b32.cont [11/16] 0.0, 128
    %351 = vxpose.xlu0.b32.cont [12/16] 0.0, 128
    %352 = vxpose.xlu0.b32.cont [13/16] 0.0, 128
    %353 = vxpose.xlu0.b32.cont [14/16] 0.0, 128
    %354 = vxpose.xlu0.b32.cont [15/16] 0.0, 128
    %355 = vxpose.xlu0.b32.end [16/16] 0.0, 128
    %v356 = vpop.trf.xlu0
    %v357 = vpop.trf.xlu0
    %v358 = vpop.trf.xlu0
    %v359 = vpop.trf.xlu0
    %v360 = vpop.trf.xlu0
    %v361 = vpop.trf.xlu0
    %v362 = vpop.trf.xlu0
    %v363 = vpop.trf.xlu0
    %v364 = vpop.trf.xlu0
    %v365 = vpop.trf.xlu0
    %v366 = vpop.trf.xlu0
    %v367 = vpop.trf.xlu0
    %v368 = vpop.trf.xlu0
    %v369 = vpop.trf.xlu0
    %v370 = vpop.trf.xlu0
    %v371 = vpop.trf.xlu0
    %s372 = scalar_lea.vmem %s5, 128
    %373 = vst.msk [vmem:[%s372] sm:$0xff] %vm308, %v356
    %374 = vst.msk [vmem:[%s372 + $0x8] sm:$0xff] %vm308, %v357
    %375 = vst.msk [vmem:[%s372 + $0x10] sm:$0xff] %vm308, %v358
    %376 = vst.msk [vmem:[%s372 + $0x18] sm:$0xff] %vm308, %v359
    %377 = vst.msk [vmem:[%s372 + $0x20] sm:$0xff] %vm308, %v360
    %378 = vst.msk [vmem:[%s372 + $0x28] sm:$0xff] %vm308, %v361
    %379 = vst.msk [vmem:[%s372 + $0x30] sm:$0xff] %vm308, %v362
    %380 = vst.msk [vmem:[%s372 + $0x38] sm:$0xff] %vm308, %v363
    %381 = vst.msk [vmem:[%s372 + $0x40] sm:$0xff] %vm308, %v364
    %382 = vst.msk [vmem:[%s372 + $0x48] sm:$0xff] %vm308, %v365
    %383 = vst.msk [vmem:[%s372 + $0x50] sm:$0xff] %vm308, %v366
    %384 = vst.msk [vmem:[%s372 + $0x58] sm:$0xff] %vm308, %v367
    %385 = vst.msk [vmem:[%s372 + $0x60] sm:$0xff] %vm308, %v368
    %386 = vst.msk [vmem:[%s372 + $0x68] sm:$0xff] %vm308, %v369
    %387 = vst.msk [vmem:[%s372 + $0x70] sm:$0xff] %vm308, %v370
    %388 = vst.msk [vmem:[%s372 + $0x78] sm:$0xff] %vm308, %v371
    %v389 = vrot.slane %v160, 2
    %v390 = vrot.slane %v165, 1
    %v391 = vsel %vm255, %v390, %v389
    %v392 = vsel %vm258, %v170, %v391
    %v393 = vrot.slane %v175, 7
    %v394 = vsel %vm261, %v393, %v392
    %v395 = vrot.slane %v180, 6
    %v396 = vsel %vm264, %v395, %v394
    %v397 = vrot.slane %v185, 5
    %v398 = vsel %vm267, %v397, %v396
    %v399 = vrot.slane %v190, 4
    %v400 = vsel %vm270, %v399, %v398
    %v401 = vrot.slane %v195, 3
    %v402 = vsel %vm273, %v401, %v400
    %404 = vxpose.xlu0.b32.start [1/16] %v402, 128
    %405 = vxpose.xlu0.b32.cont [2/16] 0.0, 128
    %406 = vxpose.xlu0.b32.cont [3/16] 0.0, 128
    %407 = vxpose.xlu0.b32.cont [4/16] 0.0, 128
    %408 = vxpose.xlu0.b32.cont [5/16] 0.0, 128
    %409 = vxpose.xlu0.b32.cont [6/16] 0.0, 128
    %410 = vxpose.xlu0.b32.cont [7/16] 0.0, 128
    %411 = vxpose.xlu0.b32.cont [8/16] 0.0, 128
    %412 = vxpose.xlu0.b32.cont [9/16] 0.0, 128
    %413 = vxpose.xlu0.b32.cont [10/16] 0.0, 128
    %414 = vxpose.xlu0.b32.cont [11/16] 0.0, 128
    %415 = vxpose.xlu0.b32.cont [12/16] 0.0, 128
    %416 = vxpose.xlu0.b32.cont [13/16] 0.0, 128
    %417 = vxpose.xlu0.b32.cont [14/16] 0.0, 128
    %418 = vxpose.xlu0.b32.cont [15/16] 0.0, 128
    %419 = vxpose.xlu0.b32.end [16/16] 0.0, 128
    %v420 = vpop.trf.xlu0
    %v421 = vpop.trf.xlu0
    %v422 = vpop.trf.xlu0
    %v423 = vpop.trf.xlu0
    %v424 = vpop.trf.xlu0
    %v425 = vpop.trf.xlu0
    %v426 = vpop.trf.xlu0
    %v427 = vpop.trf.xlu0
    %v428 = vpop.trf.xlu0
    %v429 = vpop.trf.xlu0
    %v430 = vpop.trf.xlu0
    %v431 = vpop.trf.xlu0
    %v432 = vpop.trf.xlu0
    %v433 = vpop.trf.xlu0
    %v434 = vpop.trf.xlu0
    %v435 = vpop.trf.xlu0
    %s436 = scalar_lea.vmem %s5, 256
    %437 = vst.msk [vmem:[%s436] sm:$0xff] %vm308, %v420
    %438 = vst.msk [vmem:[%s436 + $0x8] sm:$0xff] %vm308, %v421
    %439 = vst.msk [vmem:[%s436 + $0x10] sm:$0xff] %vm308, %v422
    %440 = vst.msk [vmem:[%s436 + $0x18] sm:$0xff] %vm308, %v423
    %441 = vst.msk [vmem:[%s436 + $0x20] sm:$0xff] %vm308, %v424
    %442 = vst.msk [vmem:[%s436 + $0x28] sm:$0xff] %vm308, %v425
    %443 = vst.msk [vmem:[%s436 + $0x30] sm:$0xff] %vm308, %v426
    %444 = vst.msk [vmem:[%s436 + $0x38] sm:$0xff] %vm308, %v427
    %445 = vst.msk [vmem:[%s436 + $0x40] sm:$0xff] %vm308, %v428
    %446 = vst.msk [vmem:[%s436 + $0x48] sm:$0xff] %vm308, %v429
    %447 = vst.msk [vmem:[%s436 + $0x50] sm:$0xff] %vm308, %v430
    %448 = vst.msk [vmem:[%s436 + $0x58] sm:$0xff] %vm308, %v431
    %449 = vst.msk [vmem:[%s436 + $0x60] sm:$0xff] %vm308, %v432
    %450 = vst.msk [vmem:[%s436 + $0x68] sm:$0xff] %vm308, %v433
    %451 = vst.msk [vmem:[%s436 + $0x70] sm:$0xff] %vm308, %v434
    %452 = vst.msk [vmem:[%s436 + $0x78] sm:$0xff] %vm308, %v435
    %v453 = vrot.slane %v160, 3
    %v454 = vrot.slane %v165, 2
    %v455 = vsel %vm255, %v454, %v453
    %v456 = vrot.slane %v170, 1
    %v457 = vsel %vm258, %v456, %v455
    %v458 = vsel %vm261, %v175, %v457
    %v459 = vrot.slane %v180, 7
    %v460 = vsel %vm264, %v459, %v458
    %v461 = vrot.slane %v185, 6
    %v462 = vsel %vm267, %v461, %v460
    %v463 = vrot.slane %v190, 5
    %v464 = vsel %vm270, %v463, %v462
    %v465 = vrot.slane %v195, 4
    %v466 = vsel %vm273, %v465, %v464
    %468 = vxpose.xlu0.b32.start [1/16] %v466, 128
    %469 = vxpose.xlu0.b32.cont [2/16] 0.0, 128
    %470 = vxpose.xlu0.b32.cont [3/16] 0.0, 128
    %471 = vxpose.xlu0.b32.cont [4/16] 0.0, 128
    %472 = vxpose.xlu0.b32.cont [5/16] 0.0, 128
    %473 = vxpose.xlu0.b32.cont [6/16] 0.0, 128
    %474 = vxpose.xlu0.b32.cont [7/16] 0.0, 128
    %475 = vxpose.xlu0.b32.cont [8/16] 0.0, 128
    %476 = vxpose.xlu0.b32.cont [9/16] 0.0, 128
    %477 = vxpose.xlu0.b32.cont [10/16] 0.0, 128
    %478 = vxpose.xlu0.b32.cont [11/16] 0.0, 128
    %479 = vxpose.xlu0.b32.cont [12/16] 0.0, 128
    %480 = vxpose.xlu0.b32.cont [13/16] 0.0, 128
    %481 = vxpose.xlu0.b32.cont [14/16] 0.0, 128
    %482 = vxpose.xlu0.b32.cont [15/16] 0.0, 128
    %483 = vxpose.xlu0.b32.end [16/16] 0.0, 128
    %v484 = vpop.trf.xlu0
    %v485 = vpop.trf.xlu0
    %v486 = vpop.trf.xlu0
    %v487 = vpop.trf.xlu0
    %v488 = vpop.trf.xlu0
    %v489 = vpop.trf.xlu0
    %v490 = vpop.trf.xlu0
    %v491 = vpop.trf.xlu0
    %v492 = vpop.trf.xlu0
    %v493 = vpop.trf.xlu0
    %v494 = vpop.trf.xlu0
    %v495 = vpop.trf.xlu0
    %v496 = vpop.trf.xlu0
    %v497 = vpop.trf.xlu0
    %v498 = vpop.trf.xlu0
    %v499 = vpop.trf.xlu0
    %s500 = scalar_lea.vmem %s5, 384
    %501 = vst.msk [vmem:[%s500] sm:$0xff] %vm308, %v484
    %502 = vst.msk [vmem:[%s500 + $0x8] sm:$0xff] %vm308, %v485
    %503 = vst.msk [vmem:[%s500 + $0x10] sm:$0xff] %vm308, %v486
    %504 = vst.msk [vmem:[%s500 + $0x18] sm:$0xff] %vm308, %v487
    %505 = vst.msk [vmem:[%s500 + $0x20] sm:$0xff] %vm308, %v488
    %506 = vst.msk [vmem:[%s500 + $0x28] sm:$0xff] %vm308, %v489
    %507 = vst.msk [vmem:[%s500 + $0x30] sm:$0xff] %vm308, %v490
    %508 = vst.msk [vmem:[%s500 + $0x38] sm:$0xff] %vm308, %v491
    %509 = vst.msk [vmem:[%s500 + $0x40] sm:$0xff] %vm308, %v492
    %510 = vst.msk [vmem:[%s500 + $0x48] sm:$0xff] %vm308, %v493
    %511 = vst.msk [vmem:[%s500 + $0x50] sm:$0xff] %vm308, %v494
    %512 = vst.msk [vmem:[%s500 + $0x58] sm:$0xff] %vm308, %v495
    %513 = vst.msk [vmem:[%s500 + $0x60] sm:$0xff] %vm308, %v496
    %514 = vst.msk [vmem:[%s500 + $0x68] sm:$0xff] %vm308, %v497
    %515 = vst.msk [vmem:[%s500 + $0x70] sm:$0xff] %vm308, %v498
    %516 = vst.msk [vmem:[%s500 + $0x78] sm:$0xff] %vm308, %v499
    %v517 = vrot.slane %v160, 4
    %v518 = vrot.slane %v165, 3
    %v519 = vsel %vm255, %v518, %v517
    %v520 = vrot.slane %v170, 2
    %v521 = vsel %vm258, %v520, %v519
    %v522 = vrot.slane %v175, 1
    %v523 = vsel %vm261, %v522, %v521
    %v524 = vsel %vm264, %v180, %v523
    %v525 = vrot.slane %v185, 7
    %v526 = vsel %vm267, %v525, %v524
    %v527 = vrot.slane %v190, 6
    %v528 = vsel %vm270, %v527, %v526
    %v529 = vrot.slane %v195, 5
    %v530 = vsel %vm273, %v529, %v528
    %532 = vxpose.xlu0.b32.start [1/16] %v530, 128
    %533 = vxpose.xlu0.b32.cont [2/16] 0.0, 128
    %534 = vxpose.xlu0.b32.cont [3/16] 0.0, 128
    %535 = vxpose.xlu0.b32.cont [4/16] 0.0, 128
    %536 = vxpose.xlu0.b32.cont [5/16] 0.0, 128
    %537 = vxpose.xlu0.b32.cont [6/16] 0.0, 128
    %538 = vxpose.xlu0.b32.cont [7/16] 0.0, 128
    %539 = vxpose.xlu0.b32.cont [8/16] 0.0, 128
    %540 = vxpose.xlu0.b32.cont [9/16] 0.0, 128
    %541 = vxpose.xlu0.b32.cont [10/16] 0.0, 128
    %542 = vxpose.xlu0.b32.cont [11/16] 0.0, 128
    %543 = vxpose.xlu0.b32.cont [12/16] 0.0, 128
    %544 = vxpose.xlu0.b32.cont [13/16] 0.0, 128
    %545 = vxpose.xlu0.b32.cont [14/16] 0.0, 128
    %546 = vxpose.xlu0.b32.cont [15/16] 0.0, 128
    %547 = vxpose.xlu0.b32.end [16/16] 0.0, 128
    %v548 = vpop.trf.xlu0
    %v549 = vpop.trf.xlu0
    %v550 = vpop.trf.xlu0
    %v551 = vpop.trf.xlu0
    %v552 = vpop.trf.xlu0
    %v553 = vpop.trf.xlu0
    %v554 = vpop.trf.xlu0
    %v555 = vpop.trf.xlu0
    %v556 = vpop.trf.xlu0
    %v557 = vpop.trf.xlu0
    %v558 = vpop.trf.xlu0
    %v559 = vpop.trf.xlu0
    %v560 = vpop.trf.xlu0
    %v561 = vpop.trf.xlu0
    %v562 = vpop.trf.xlu0
    %v563 = vpop.trf.xlu0
    %s564 = scalar_lea.vmem %s5, 512
    %565 = vst.msk [vmem:[%s564] sm:$0xff] %vm308, %v548
    %566 = vst.msk [vmem:[%s564 + $0x8] sm:$0xff] %vm308, %v549
    %567 = vst.msk [vmem:[%s564 + $0x10] sm:$0xff] %vm308, %v550
    %568 = vst.msk [vmem:[%s564 + $0x18] sm:$0xff] %vm308, %v551
    %569 = vst.msk [vmem:[%s564 + $0x20] sm:$0xff] %vm308, %v552
    %570 = vst.msk [vmem:[%s564 + $0x28] sm:$0xff] %vm308, %v553
    %571 = vst.msk [vmem:[%s564 + $0x30] sm:$0xff] %vm308, %v554
    %572 = vst.msk [vmem:[%s564 + $0x38] sm:$0xff] %vm308, %v555
    %573 = vst.msk [vmem:[%s564 + $0x40] sm:$0xff] %vm308, %v556
    %574 = vst.msk [vmem:[%s564 + $0x48] sm:$0xff] %vm308, %v557
    %575 = vst.msk [vmem:[%s564 + $0x50] sm:$0xff] %vm308, %v558
    %576 = vst.msk [vmem:[%s564 + $0x58] sm:$0xff] %vm308, %v559
    %577 = vst.msk [vmem:[%s564 + $0x60] sm:$0xff] %vm308, %v560
    %578 = vst.msk [vmem:[%s564 + $0x68] sm:$0xff] %vm308, %v561
    %579 = vst.msk [vmem:[%s564 + $0x70] sm:$0xff] %vm308, %v562
    %580 = vst.msk [vmem:[%s564 + $0x78] sm:$0xff] %vm308, %v563
    %v581 = vrot.slane %v160, 5
    %v582 = vrot.slane %v165, 4
    %v583 = vsel %vm255, %v582, %v581
    %v584 = vrot.slane %v170, 3
    %v585 = vsel %vm258, %v584, %v583
    %v586 = vrot.slane %v175, 2
    %v587 = vsel %vm261, %v586, %v585
    %v588 = vrot.slane %v180, 1
    %v589 = vsel %vm264, %v588, %v587
    %v590 = vsel %vm267, %v185, %v589
    %v591 = vrot.slane %v190, 7
    %v592 = vsel %vm270, %v591, %v590
    %v593 = vrot.slane %v195, 6
    %v594 = vsel %vm273, %v593, %v592
    %596 = vxpose.xlu0.b32.start [1/16] %v594, 128
    %597 = vxpose.xlu0.b32.cont [2/16] 0.0, 128
    %598 = vxpose.xlu0.b32.cont [3/16] 0.0, 128
    %599 = vxpose.xlu0.b32.cont [4/16] 0.0, 128
    %600 = vxpose.xlu0.b32.cont [5/16] 0.0, 128
    %601 = vxpose.xlu0.b32.cont [6/16] 0.0, 128
    %602 = vxpose.xlu0.b32.cont [7/16] 0.0, 128
    %603 = vxpose.xlu0.b32.cont [8/16] 0.0, 128
    %604 = vxpose.xlu0.b32.cont [9/16] 0.0, 128
    %605 = vxpose.xlu0.b32.cont [10/16] 0.0, 128
    %606 = vxpose.xlu0.b32.cont [11/16] 0.0, 128
    %607 = vxpose.xlu0.b32.cont [12/16] 0.0, 128
    %608 = vxpose.xlu0.b32.cont [13/16] 0.0, 128
    %609 = vxpose.xlu0.b32.cont [14/16] 0.0, 128
    %610 = vxpose.xlu0.b32.cont [15/16] 0.0, 128
    %611 = vxpose.xlu0.b32.end [16/16] 0.0, 128
    %v612 = vpop.trf.xlu0
    %v613 = vpop.trf.xlu0
    %v614 = vpop.trf.xlu0
    %v615 = vpop.trf.xlu0
    %v616 = vpop.trf.xlu0
    %v617 = vpop.trf.xlu0
    %v618 = vpop.trf.xlu0
    %v619 = vpop.trf.xlu0
    %v620 = vpop.trf.xlu0
    %v621 = vpop.trf.xlu0
    %v622 = vpop.trf.xlu0
    %v623 = vpop.trf.xlu0
    %v624 = vpop.trf.xlu0
    %v625 = vpop.trf.xlu0
    %v626 = vpop.trf.xlu0
    %v627 = vpop.trf.xlu0
    %s628 = scalar_lea.vmem %s5, 640
    %629 = vst.msk [vmem:[%s628] sm:$0xff] %vm308, %v612
    %630 = vst.msk [vmem:[%s628 + $0x8] sm:$0xff] %vm308, %v613
    %631 = vst.msk [vmem:[%s628 + $0x10] sm:$0xff] %vm308, %v614
    %632 = vst.msk [vmem:[%s628 + $0x18] sm:$0xff] %vm308, %v615
    %633 = vst.msk [vmem:[%s628 + $0x20] sm:$0xff] %vm308, %v616
    %634 = vst.msk [vmem:[%s628 + $0x28] sm:$0xff] %vm308, %v617
    %635 = vst.msk [vmem:[%s628 + $0x30] sm:$0xff] %vm308, %v618
    %636 = vst.msk [vmem:[%s628 + $0x38] sm:$0xff] %vm308, %v619
    %637 = vst.msk [vmem:[%s628 + $0x40] sm:$0xff] %vm308, %v620
    %638 = vst.msk [vmem:[%s628 + $0x48] sm:$0xff] %vm308, %v621
    %639 = vst.msk [vmem:[%s628 + $0x50] sm:$0xff] %vm308, %v622
    %640 = vst.msk [vmem:[%s628 + $0x58] sm:$0xff] %vm308, %v623
    %641 = vst.msk [vmem:[%s628 + $0x60] sm:$0xff] %vm308, %v624
    %642 = vst.msk [vmem:[%s628 + $0x68] sm:$0xff] %vm308, %v625
    %643 = vst.msk [vmem:[%s628 + $0x70] sm:$0xff] %vm308, %v626
    %644 = vst.msk [vmem:[%s628 + $0x78] sm:$0xff] %vm308, %v627
    %v645 = vrot.slane %v160, 6
    %v646 = vrot.slane %v165, 5
    %v647 = vsel %vm255, %v646, %v645
    %v648 = vrot.slane %v170, 4
    %v649 = vsel %vm258, %v648, %v647
    %v650 = vrot.slane %v175, 3
    %v651 = vsel %vm261, %v650, %v649
    %v652 = vrot.slane %v180, 2
    %v653 = vsel %vm264, %v652, %v651
    %v654 = vrot.slane %v185, 1
    %v655 = vsel %vm267, %v654, %v653
    %v656 = vsel %vm270, %v190, %v655
    %v657 = vrot.slane %v195, 7
    %v658 = vsel %vm273, %v657, %v656
    %660 = vxpose.xlu0.b32.start [1/16] %v658, 128
    %661 = vxpose.xlu0.b32.cont [2/16] 0.0, 128
    %662 = vxpose.xlu0.b32.cont [3/16] 0.0, 128
    %663 = vxpose.xlu0.b32.cont [4/16] 0.0, 128
    %664 = vxpose.xlu0.b32.cont [5/16] 0.0, 128
    %665 = vxpose.xlu0.b32.cont [6/16] 0.0, 128
    %666 = vxpose.xlu0.b32.cont [7/16] 0.0, 128
    %667 = vxpose.xlu0.b32.cont [8/16] 0.0, 128
    %668 = vxpose.xlu0.b32.cont [9/16] 0.0, 128
    %669 = vxpose.xlu0.b32.cont [10/16] 0.0, 128
    %670 = vxpose.xlu0.b32.cont [11/16] 0.0, 128
    %671 = vxpose.xlu0.b32.cont [12/16] 0.0, 128
    %672 = vxpose.xlu0.b32.cont [13/16] 0.0, 128
    %673 = vxpose.xlu0.b32.cont [14/16] 0.0, 128
    %674 = vxpose.xlu0.b32.cont [15/16] 0.0, 128
    %675 = vxpose.xlu0.b32.end [16/16] 0.0, 128
    %v676 = vpop.trf.xlu0
    %v677 = vpop.trf.xlu0
    %v678 = vpop.trf.xlu0
    %v679 = vpop.trf.xlu0
    %v680 = vpop.trf.xlu0
    %v681 = vpop.trf.xlu0
    %v682 = vpop.trf.xlu0
    %v683 = vpop.trf.xlu0
    %v684 = vpop.trf.xlu0
    %v685 = vpop.trf.xlu0
    %v686 = vpop.trf.xlu0
    %v687 = vpop.trf.xlu0
    %v688 = vpop.trf.xlu0
    %v689 = vpop.trf.xlu0
    %v690 = vpop.trf.xlu0
    %v691 = vpop.trf.xlu0
    %s692 = scalar_lea.vmem %s5, 768
    %693 = vst.msk [vmem:[%s692] sm:$0xff] %vm308, %v676
    %694 = vst.msk [vmem:[%s692 + $0x8] sm:$0xff] %vm308, %v677
    %695 = vst.msk [vmem:[%s692 + $0x10] sm:$0xff] %vm308, %v678
    %696 = vst.msk [vmem:[%s692 + $0x18] sm:$0xff] %vm308, %v679
    %697 = vst.msk [vmem:[%s692 + $0x20] sm:$0xff] %vm308, %v680
    %698 = vst.msk [vmem:[%s692 + $0x28] sm:$0xff] %vm308, %v681
    %699 = vst.msk [vmem:[%s692 + $0x30] sm:$0xff] %vm308, %v682
    %700 = vst.msk [vmem:[%s692 + $0x38] sm:$0xff] %vm308, %v683
    %701 = vst.msk [vmem:[%s692 + $0x40] sm:$0xff] %vm308, %v684
    %702 = vst.msk [vmem:[%s692 + $0x48] sm:$0xff] %vm308, %v685
    %703 = vst.msk [vmem:[%s692 + $0x50] sm:$0xff] %vm308, %v686
    %704 = vst.msk [vmem:[%s692 + $0x58] sm:$0xff] %vm308, %v687
    %705 = vst.msk [vmem:[%s692 + $0x60] sm:$0xff] %vm308, %v688
    %706 = vst.msk [vmem:[%s692 + $0x68] sm:$0xff] %vm308, %v689
    %707 = vst.msk [vmem:[%s692 + $0x70] sm:$0xff] %vm308, %v690
    %708 = vst.msk [vmem:[%s692 + $0x78] sm:$0xff] %vm308, %v691
    %v709 = vrot.slane %v160, 7
    %v710 = vrot.slane %v165, 6
    %v711 = vsel %vm255, %v710, %v709
    %v712 = vrot.slane %v170, 5
    %v713 = vsel %vm258, %v712, %v711
    %v714 = vrot.slane %v175, 4
    %v715 = vsel %vm261, %v714, %v713
    %v716 = vrot.slane %v180, 3
    %v717 = vsel %vm264, %v716, %v715
    %v718 = vrot.slane %v185, 2
    %v719 = vsel %vm267, %v718, %v717
    %v720 = vrot.slane %v190, 1
    %v721 = vsel %vm270, %v720, %v719
    %v722 = vsel %vm273, %v195, %v721
    %724 = vxpose.xlu0.b32.start [1/16] %v722, 128
    %725 = vxpose.xlu0.b32.cont [2/16] 0.0, 128
    %726 = vxpose.xlu0.b32.cont [3/16] 0.0, 128
    %727 = vxpose.xlu0.b32.cont [4/16] 0.0, 128
    %728 = vxpose.xlu0.b32.cont [5/16] 0.0, 128
    %729 = vxpose.xlu0.b32.cont [6/16] 0.0, 128
    %730 = vxpose.xlu0.b32.cont [7/16] 0.0, 128
    %731 = vxpose.xlu0.b32.cont [8/16] 0.0, 128
    %732 = vxpose.xlu0.b32.cont [9/16] 0.0, 128
    %733 = vxpose.xlu0.b32.cont [10/16] 0.0, 128
    %734 = vxpose.xlu0.b32.cont [11/16] 0.0, 128
    %735 = vxpose.xlu0.b32.cont [12/16] 0.0, 128
    %736 = vxpose.xlu0.b32.cont [13/16] 0.0, 128
    %737 = vxpose.xlu0.b32.cont [14/16] 0.0, 128
    %738 = vxpose.xlu0.b32.cont [15/16] 0.0, 128
    %739 = vxpose.xlu0.b32.end [16/16] 0.0, 128
    %v740 = vpop.trf.xlu0
    %v741 = vpop.trf.xlu0
    %v742 = vpop.trf.xlu0
    %v743 = vpop.trf.xlu0
    %v744 = vpop.trf.xlu0
    %v745 = vpop.trf.xlu0
    %v746 = vpop.trf.xlu0
    %v747 = vpop.trf.xlu0
    %v748 = vpop.trf.xlu0
    %v749 = vpop.trf.xlu0
    %v750 = vpop.trf.xlu0
    %v751 = vpop.trf.xlu0
    %v752 = vpop.trf.xlu0
    %v753 = vpop.trf.xlu0
    %v754 = vpop.trf.xlu0
    %v755 = vpop.trf.xlu0
    %s756 = scalar_lea.vmem %s5, 896
    %757 = vst.msk [vmem:[%s756] sm:$0xff] %vm308, %v740
    %758 = vst.msk [vmem:[%s756 + $0x8] sm:$0xff] %vm308, %v741
    %759 = vst.msk [vmem:[%s756 + $0x10] sm:$0xff] %vm308, %v742
    %760 = vst.msk [vmem:[%s756 + $0x18] sm:$0xff] %vm308, %v743
    %761 = vst.msk [vmem:[%s756 + $0x20] sm:$0xff] %vm308, %v744
    %762 = vst.msk [vmem:[%s756 + $0x28] sm:$0xff] %vm308, %v745
    %763 = vst.msk [vmem:[%s756 + $0x30] sm:$0xff] %vm308, %v746
    %764 = vst.msk [vmem:[%s756 + $0x38] sm:$0xff] %vm308, %v747
    %765 = vst.msk [vmem:[%s756 + $0x40] sm:$0xff] %vm308, %v748
    %766 = vst.msk [vmem:[%s756 + $0x48] sm:$0xff] %vm308, %v749
    %767 = vst.msk [vmem:[%s756 + $0x50] sm:$0xff] %vm308, %v750
    %768 = vst.msk [vmem:[%s756 + $0x58] sm:$0xff] %vm308, %v751
    %769 = vst.msk [vmem:[%s756 + $0x60] sm:$0xff] %vm308, %v752
    %770 = vst.msk [vmem:[%s756 + $0x68] sm:$0xff] %vm308, %v753
    %771 = vst.msk [vmem:[%s756 + $0x70] sm:$0xff] %vm308, %v754
    %772 = vst.msk [vmem:[%s756 + $0x78] sm:$0xff] %vm308, %v755
    %v781 = vlaneseq
    %v782 = vand.u32 %v781, 127
    %v783 = vlaneseq
    %v784 = vshrl.u32 %v783, 7
    %v785 = vsub.s32 %v782, %v784
    %v786 = vrot.slane %v231, %v785
    %v787 = vlaneseq
    %v788 = vshrl.u32 %v787, 7
    %v789 = vsub.s32 %v782, %v788
    %v790 = vrot.slane %v233, %v789
    %v791 = vlaneseq
    %v792 = vshrl.u32 %v791, 7
    %v793 = vsub.s32 %v782, %v792
    %v794 = vrot.slane %v235, %v793
    %v795 = vlaneseq
    %v796 = vshrl.u32 %v795, 7
    %v797 = vsub.s32 %v782, %v796
    %v798 = vrot.slane %v237, %v797
    %v799 = vlaneseq
    %v800 = vshrl.u32 %v799, 7
    %v801 = vsub.s32 %v782, %v800
    %v802 = vrot.slane %v239, %v801
    %v803 = vlaneseq
    %v804 = vshrl.u32 %v803, 7
    %v805 = vsub.s32 %v782, %v804
    %v806 = vrot.slane %v241, %v805
    %v807 = vlaneseq
    %v808 = vshrl.u32 %v807, 7
    %v809 = vsub.s32 %v782, %v808
    %v810 = vrot.slane %v243, %v809
    %v811 = vlaneseq
    %v812 = vshrl.u32 %v811, 7
    %v813 = vsub.s32 %v782, %v812
    %v814 = vrot.slane %v245, %v813
    %v815 = vsel %vm255, %v790, %v786
    %v816 = vsel %vm258, %v794, %v815
    %v817 = vsel %vm261, %v798, %v816
    %v818 = vsel %vm264, %v802, %v817
    %v819 = vsel %vm267, %v806, %v818
    %v820 = vsel %vm270, %v810, %v819
    %v821 = vsel %vm273, %v814, %v820
    %823 = vxpose.xlu0.b32.start [1/16] %v821, 128
    %824 = vxpose.xlu0.b32.cont [2/16] 0.0, 128
    %825 = vxpose.xlu0.b32.cont [3/16] 0.0, 128
    %826 = vxpose.xlu0.b32.cont [4/16] 0.0, 128
    %827 = vxpose.xlu0.b32.cont [5/16] 0.0, 128
    %828 = vxpose.xlu0.b32.cont [6/16] 0.0, 128
    %829 = vxpose.xlu0.b32.cont [7/16] 0.0, 128
    %830 = vxpose.xlu0.b32.cont [8/16] 0.0, 128
    %831 = vxpose.xlu0.b32.cont [9/16] 0.0, 128
    %832 = vxpose.xlu0.b32.cont [10/16] 0.0, 128
    %833 = vxpose.xlu0.b32.cont [11/16] 0.0, 128
    %834 = vxpose.xlu0.b32.cont [12/16] 0.0, 128
    %835 = vxpose.xlu0.b32.cont [13/16] 0.0, 128
    %836 = vxpose.xlu0.b32.cont [14/16] 0.0, 128
    %837 = vxpose.xlu0.b32.cont [15/16] 0.0, 128
    %838 = vxpose.xlu0.b32.end [16/16] 0.0, 128
    %v839 = vpop.trf.xlu0
    %v840 = vpop.trf.xlu0
    %v841 = vpop.trf.xlu0
    %v842 = vpop.trf.xlu0
    %v843 = vpop.trf.xlu0
    %v844 = vpop.trf.xlu0
    %v845 = vpop.trf.xlu0
    %v846 = vpop.trf.xlu0
    %v847 = vpop.trf.xlu0
    %v848 = vpop.trf.xlu0
    %v849 = vpop.trf.xlu0
    %v850 = vpop.trf.xlu0
    %v851 = vpop.trf.xlu0
    %v852 = vpop.trf.xlu0
    %v853 = vpop.trf.xlu0
    %v854 = vpop.trf.xlu0
    %855 = vst.msk [vmem:[#allocation8] sm:$0xff] %vm308, %v839
    // Predicated region
    $region34: #{tpu_custom_call.1} parent=1 // pred_check
      _
    $region35: #{tpu_custom_call.1} parent=1 // pred_check_branch
      %857 = sbr.rel (0) target = $region37
    $region36: #{tpu_custom_call.1} parent=1 // pred_region
      _
    $region37: #{tpu_custom_call.1} parent=1 // pred_fallthru
      _
    // Predicated region
    $region38: #{tpu_custom_call.1} parent=1 // pred_check
      _
    $region39: #{tpu_custom_call.1} parent=1 // pred_check_branch
      %859 = sbr.rel (0) target = $region41
    $region40: #{tpu_custom_call.1} parent=1 // pred_region
      %s861 = ssub.s32 128, 128
      %862 = vsyncadd [#allocation4], %s861
      %s864 = sshll.u32 [#allocation8], 4
      %s865 = int_to_ptr.vmem [resolvable:$true] %s864
      %867 = dma.vmem_to_hbm [thread:$0]  %s865, 128, %s6, [#allocation4]
    $region41: #{tpu_custom_call.1} parent=1 // pred_fallthru
      _
    // Predicated region
    $region42: #{tpu_custom_call.1} parent=1 // pred_check
      _
    $region43: #{tpu_custom_call.1} parent=1 // pred_check_branch
      %869 = sbr.rel (0) target = $region45
    $region44: #{tpu_custom_call.1} parent=1 // pred_region
      _
    $region45: #{tpu_custom_call.1} parent=1 // pred_fallthru
      _
    // Predicated region
    $region46: #{tpu_custom_call.1} parent=1 // pred_check
      _
    $region47: #{tpu_custom_call.1} parent=1 // pred_check_branch
      %871 = sbr.rel (0) target = $region49
    $region48: #{tpu_custom_call.1} parent=1 // pred_region
      %872 = dma.done [#allocation4], 128
    $region49: #{tpu_custom_call.1} parent=1 // pred_fallthru
      _
    %873 = vsyncpa [#allocation3], 1
    %874 = vsyncpa [#allocation6], 1
    %875 = vsyncpa [#allocation4], 1

</llo_original>
